<compile_context>
chip_gen: v7x
topology: tpu7x:2x2x1
jax: 0.10.0
libtpu: 0.0.40
codegen_flags: <defaults>
</compile_context>

<pallas_src>
import jax
import jax.numpy as jnp
from jax import lax
from jax.experimental import pallas as pl
from jax.experimental.pallas import tpu as pltpu

_LANE = 128  # TPU lane width: trailing feature dims are padded to this.


def _round_up(n, m):
    return ((n + m - 1) // m) * m


def _pad2d(arr, rows, cols):
    r, c = arr.shape
    return jnp.pad(arr, ((0, rows - r), (0, cols - c)))


# ----------------------------------------------------------------------------
# Fused forward kernel: all GraphSage layers + post-MP MLP + log_softmax.
# Everything (adjacency, features, weights) is VMEM-resident for one call.
# ----------------------------------------------------------------------------
def _make_fused_kernel(num_layers, output_dim):
    def kernel(*refs):
        a_ref, x_ref = refs[0], refs[1]
        conv_refs = refs[2:2 + 2 * num_layers]
        w1_ref, b1_ref, w2_ref, b2_ref = refs[2 + 2 * num_layers:-1]
        o_ref = refs[-1]

        a = a_ref[...]                       # (N, N)   bf16
        x = x_ref[...]                       # (N, Fp)  bf16

        for l in range(num_layers):
            w_ref = conv_refs[2 * l]         # (2*Din_p, Hp) bf16 = [[W_l],[W_r]]
            b_ref = conv_refs[2 * l + 1]     # (1, Hp)       f32  = b_l + b_r
            # Mean aggregation of neighbor features on the MXU.
            # (Din <= H here, so aggregate first; for Din > H one would
            #  instead compute A @ (x @ W_r) to shrink the N*N contraction.)
            agg = jnp.dot(a, x, preferred_element_type=jnp.float32)
            # Single fused matmul for both Linears: [x | agg] @ [[W_l],[W_r]].
            xcat = jnp.concatenate([x, agg.astype(jnp.bfloat16)], axis=-1)
            h = jnp.dot(xcat, w_ref[...],
                        preferred_element_type=jnp.float32) + b_ref[...]
            # F.normalize(h, p=2, dim=-1) with eps=1e-12, via EUP rsqrt.
            # (padded columns of h are exactly zero, so the norm is unaffected)
            sumsq = jnp.sum(h * h, axis=-1, keepdims=True)
            h = h * lax.rsqrt(jnp.maximum(sumsq, 1e-24))
            # F.relu (dropout is identity at inference); bf16 for next matmul.
            x = jnp.maximum(h, 0.0).astype(jnp.bfloat16)

        # post_mp: Linear -> Dropout(identity) -> Linear.
        h1 = jnp.dot(x, w1_ref[...],
                     preferred_element_type=jnp.float32) + b1_ref[...]
        logits = jnp.dot(h1.astype(jnp.bfloat16), w2_ref[...],
                         preferred_element_type=jnp.float32) + b2_ref[...]

        # log_softmax over the real class columns only (lane padding masked).
        col = lax.broadcasted_iota(jnp.int32, logits.shape, 1)
        valid = col < output_dim
        logits = jnp.where(valid, logits, jnp.float32(-1e30))
        m = jnp.max(logits, axis=-1, keepdims=True)
        z = logits - m
        lse = jnp.log(jnp.sum(jnp.where(valid, jnp.exp(z), 0.0),
                              axis=-1, keepdims=True))
        o_ref[...] = z - lse

    return kernel


# ----------------------------------------------------------------------------
# Wrapper: pad to lane-dense widths, fuse per-layer weight pairs, single call.
# ----------------------------------------------------------------------------
@jax.jit
def gnn_stack_forward(x, a_norm, params):
    num_layers = len(params["convs"])
    n, input_dim = x.shape
    hidden_dim = params["convs"][0][0].shape[1]
    output_dim = params["post_mp"][2].shape[1]

    fp = _round_up(input_dim, _LANE)
    hp = _round_up(hidden_dim, _LANE)
    cp = _round_up(output_dim, _LANE)

    # --- parameter fusion & lane padding (traced once, outside the kernel) ---
    inputs = [a_norm.astype(jnp.bfloat16),
              _pad2d(x, n, fp).astype(jnp.bfloat16)]
    in_pad = fp
    for (w_l, b_l, w_r, b_r) in params["convs"]:
        w_cat = jnp.concatenate([_pad2d(w_l, in_pad, hp),
                                 _pad2d(w_r, in_pad, hp)], axis=0)
        inputs.append(w_cat.astype(jnp.bfloat16))                 # (2*Din_p, Hp)
        inputs.append(_pad2d(b_l + b_r, 1, hp).astype(jnp.float32))
        in_pad = hp
    w1, b1, w2, b2 = params["post_mp"]
    inputs += [
        _pad2d(w1, hp, hp).astype(jnp.bfloat16),
        _pad2d(b1, 1, hp).astype(jnp.float32),
        _pad2d(w2, hp, cp).astype(jnp.bfloat16),
        _pad2d(b2, 1, cp).astype(jnp.float32),
    ]

    out_pad = pl.pallas_call(
        _make_fused_kernel(num_layers, output_dim),
        out_shape=jax.ShapeDtypeStruct((n, cp), jnp.float32),
        # No grid: the whole (small) problem lives in VMEM for one invocation.
        # Actual VMEM usage here is well under 1 MiB; limit set explicitly
        # (32 MiB is safe on v5e / v6e / v7x).
        compiler_params=pltpu.CompilerParams(vmem_limit_bytes=32 * 1024 * 1024),
    )(*inputs)
    return out_pad[:, :output_dim]


# ----------------------------------------------------------------------------
# Graph / parameter construction and pure-JAX reference.
# ----------------------------------------------------------------------------
def build_dense_mean_adjacency(edge_index, num_nodes):
    src, dst = edge_index[0], edge_index[1]
    a = jnp.zeros((num_nodes, num_nodes), jnp.float32).at[dst, src].add(1.0)
    deg = jnp.maximum(jnp.sum(a, axis=1, keepdims=True), 1.0)
    return a / deg


def _init_linear(key, fan_in, fan_out):
    kw, kb = jax.random.split(key)
    scale = 1.0 / jnp.sqrt(jnp.float32(fan_in))
    w = jax.random.uniform(kw, (fan_in, fan_out), jnp.float32, -scale, scale)
    b = jax.random.uniform(kb, (1, fan_out), jnp.float32, -scale, scale)
    return w, b


def init_params(key, input_dim, hidden_dim, output_dim, num_layers, heads=1):
    keys = jax.random.split(key, 2 * num_layers + 2)
    convs = []
    in_dim = input_dim
    for l in range(num_layers):
        w_l, b_l = _init_linear(keys[2 * l], in_dim, hidden_dim)
        w_r, b_r = _init_linear(keys[2 * l + 1], in_dim, hidden_dim)
        convs.append((w_l, b_l, w_r, b_r))
        in_dim = heads * hidden_dim
    w1, b1 = _init_linear(keys[2 * num_layers], heads * hidden_dim, hidden_dim)
    w2, b2 = _init_linear(keys[2 * num_layers + 1], hidden_dim, output_dim)
    return {"convs": convs, "post_mp": (w1, b1, w2, b2)}


def _reference_forward(x, a, params, num_layers):
    # Pure-JAX f32 reference for sanity checking the kernel.
    for i in range(num_layers):
        w_l, b_l, w_r, b_r = params["convs"][i]
        h = x @ w_l + b_l + (a @ x) @ w_r + b_r
        h = h / jnp.maximum(jnp.sqrt(jnp.sum(h * h, -1, keepdims=True)), 1e-12)
        x = jnp.maximum(h, 0.0)
    w1, b1, w2, b2 = params["post_mp"]
    out = (x @ w1 + b1) @ w2 + b2
    return jax.nn.log_softmax(out, axis=1)


if __name__ == "__main__":
    key = jax.random.PRNGKey(0)
    k_x, k_e, k_p = jax.random.split(key, 3)

    num_nodes = 16
    num_edges = 48
    input_dim = 8
    hidden_dim = 32
    output_dim = 4
    num_layers = 2  # args.num_layers
    heads = 1       # args.heads (GraphSage -> 1)

    x = jax.random.normal(k_x, (num_nodes, input_dim), jnp.float32)
    edge_index = jax.random.randint(k_e, (2, num_edges), 0, num_nodes)
    a_norm = build_dense_mean_adjacency(edge_index, num_nodes)

    params = init_params(k_p, input_dim, hidden_dim, output_dim, num_layers, heads)

    out = gnn_stack_forward(x, a_norm, params)
    out = jax.block_until_ready(out)

    ref = _reference_forward(x, a_norm, params, num_layers)
    assert out.shape == (num_nodes, output_dim)
    # Kernel uses bf16 matmul operands with f32 accumulation, so compare
    # against the pure-f32 reference with a correspondingly looser tolerance.
    assert jnp.allclose(out, ref, atol=2e-2, rtol=2e-2), (
        float(jnp.max(jnp.abs(out - ref))))

    print("KERNEL_OK")
</pallas_src>

<mosaic_0001>
module attributes {stable_mosaic.version = 11 : i64} {
  func.func @kernel(%arg0: memref<16x16xbf16, #tpu.memory_space<vmem>>, %arg1: memref<16x128xbf16, #tpu.memory_space<vmem>>, %arg2: memref<256x128xbf16, #tpu.memory_space<vmem>>, %arg3: memref<1x128xf32, #tpu.memory_space<vmem>>, %arg4: memref<256x128xbf16, #tpu.memory_space<vmem>>, %arg5: memref<1x128xf32, #tpu.memory_space<vmem>>, %arg6: memref<128x128xbf16, #tpu.memory_space<vmem>>, %arg7: memref<1x128xf32, #tpu.memory_space<vmem>>, %arg8: memref<128x128xbf16, #tpu.memory_space<vmem>>, %arg9: memref<1x128xf32, #tpu.memory_space<vmem>>, %arg10: memref<16x128xf32, #tpu.memory_space<vmem>>) attributes {dimension_semantics = [], scalar_prefetch = 0 : i64, scratch_operands = 0 : i64, tpu.core_type = #tpu.core_type<tc>} {
    %c0 = arith.constant 0 : index
    %c0_0 = arith.constant 0 : index
    %0 = vector.load %arg0[%c0, %c0_0] : memref<16x16xbf16, #tpu.memory_space<vmem>>, vector<16x16xbf16>
    %c0_1 = arith.constant 0 : index
    %c0_2 = arith.constant 0 : index
    %1 = vector.load %arg1[%c0_1, %c0_2] : memref<16x128xbf16, #tpu.memory_space<vmem>>, vector<16x128xbf16>
    %cst = arith.constant dense<0.000000e+00> : vector<16x128xf32>
    %2 = tpu.matmul %0, %1, %cst {dimension_numbers = #tpu.dot_dimension_numbers<[1], [0], [0], [1], [0, 0, 1, 1], [], []>} : vector<16x16xbf16>, vector<16x128xbf16>, vector<16x128xf32> -> vector<16x128xf32>
    %3 = arith.truncf %2 : vector<16x128xf32> to vector<16x128xbf16>
    %4 = tpu.concatenate %1, %3 in 1 : vector<16x128xbf16>, vector<16x128xbf16> -> vector<16x256xbf16>
    %c0_3 = arith.constant 0 : index
    %c0_4 = arith.constant 0 : index
    %5 = vector.load %arg2[%c0_3, %c0_4] : memref<256x128xbf16, #tpu.memory_space<vmem>>, vector<256x128xbf16>
    %cst_5 = arith.constant dense<0.000000e+00> : vector<16x128xf32>
    %6 = tpu.matmul %4, %5, %cst_5 {dimension_numbers = #tpu.dot_dimension_numbers<[1], [0], [0], [1], [0, 0, 1, 1], [], []>} : vector<16x256xbf16>, vector<256x128xbf16>, vector<16x128xf32> -> vector<16x128xf32>
    %c0_6 = arith.constant 0 : index
    %c0_7 = arith.constant 0 : index
    %7 = vector.load %arg3[%c0_6, %c0_7] : memref<1x128xf32, #tpu.memory_space<vmem>>, vector<1x128xf32>
    %8 = vector.broadcast %7 : vector<1x128xf32> to vector<16x128xf32>
    %9 = arith.addf %6, %8 : vector<16x128xf32>
    %10 = arith.mulf %9, %9 : vector<16x128xf32>
    %cst_8 = arith.constant dense<0.000000e+00> : vector<16xf32>
    %11 = vector.multi_reduction <add>, %10, %cst_8 [1] : vector<16x128xf32> to vector<16xf32>
    %12 = vector.shape_cast %11 : vector<16xf32> to vector<16x1xf32>
    %cst_9 = arith.constant 1.000000e-24 : f32
    %13 = vector.broadcast %cst_9 : f32 to vector<16x1xf32>
    %14 = arith.maximumf %12, %13 : vector<16x1xf32>
    %15 = math.rsqrt %14 : vector<16x1xf32>
    %16 = vector.broadcast %15 : vector<16x1xf32> to vector<16x128xf32>
    %17 = arith.mulf %9, %16 : vector<16x128xf32>
    %cst_10 = arith.constant 0.000000e+00 : f32
    %18 = vector.broadcast %cst_10 : f32 to vector<16x128xf32>
    %19 = arith.maximumf %17, %18 : vector<16x128xf32>
    %20 = arith.truncf %19 : vector<16x128xf32> to vector<16x128xbf16>
    %cst_11 = arith.constant dense<0.000000e+00> : vector<16x128xf32>
    %21 = tpu.matmul %0, %20, %cst_11 {dimension_numbers = #tpu.dot_dimension_numbers<[1], [0], [0], [1], [0, 0, 1, 1], [], []>} : vector<16x16xbf16>, vector<16x128xbf16>, vector<16x128xf32> -> vector<16x128xf32>
    %22 = arith.truncf %21 : vector<16x128xf32> to vector<16x128xbf16>
    %23 = tpu.concatenate %20, %22 in 1 : vector<16x128xbf16>, vector<16x128xbf16> -> vector<16x256xbf16>
    %c0_12 = arith.constant 0 : index
    %c0_13 = arith.constant 0 : index
    %24 = vector.load %arg4[%c0_12, %c0_13] : memref<256x128xbf16, #tpu.memory_space<vmem>>, vector<256x128xbf16>
    %cst_14 = arith.constant dense<0.000000e+00> : vector<16x128xf32>
    %25 = tpu.matmul %23, %24, %cst_14 {dimension_numbers = #tpu.dot_dimension_numbers<[1], [0], [0], [1], [0, 0, 1, 1], [], []>} : vector<16x256xbf16>, vector<256x128xbf16>, vector<16x128xf32> -> vector<16x128xf32>
    %c0_15 = arith.constant 0 : index
    %c0_16 = arith.constant 0 : index
    %26 = vector.load %arg5[%c0_15, %c0_16] : memref<1x128xf32, #tpu.memory_space<vmem>>, vector<1x128xf32>
    %27 = vector.broadcast %26 : vector<1x128xf32> to vector<16x128xf32>
    %28 = arith.addf %25, %27 : vector<16x128xf32>
    %29 = arith.mulf %28, %28 : vector<16x128xf32>
    %cst_17 = arith.constant dense<0.000000e+00> : vector<16xf32>
    %30 = vector.multi_reduction <add>, %29, %cst_17 [1] : vector<16x128xf32> to vector<16xf32>
    %31 = vector.shape_cast %30 : vector<16xf32> to vector<16x1xf32>
    %cst_18 = arith.constant 1.000000e-24 : f32
    %32 = vector.broadcast %cst_18 : f32 to vector<16x1xf32>
    %33 = arith.maximumf %31, %32 : vector<16x1xf32>
    %34 = math.rsqrt %33 : vector<16x1xf32>
    %35 = vector.broadcast %34 : vector<16x1xf32> to vector<16x128xf32>
    %36 = arith.mulf %28, %35 : vector<16x128xf32>
    %cst_19 = arith.constant 0.000000e+00 : f32
    %37 = vector.broadcast %cst_19 : f32 to vector<16x128xf32>
    %38 = arith.maximumf %36, %37 : vector<16x128xf32>
    %39 = arith.truncf %38 : vector<16x128xf32> to vector<16x128xbf16>
    %c0_20 = arith.constant 0 : index
    %c0_21 = arith.constant 0 : index
    %40 = vector.load %arg6[%c0_20, %c0_21] : memref<128x128xbf16, #tpu.memory_space<vmem>>, vector<128x128xbf16>
    %cst_22 = arith.constant dense<0.000000e+00> : vector<16x128xf32>
    %41 = tpu.matmul %39, %40, %cst_22 {dimension_numbers = #tpu.dot_dimension_numbers<[1], [0], [0], [1], [0, 0, 1, 1], [], []>} : vector<16x128xbf16>, vector<128x128xbf16>, vector<16x128xf32> -> vector<16x128xf32>
    %c0_23 = arith.constant 0 : index
    %c0_24 = arith.constant 0 : index
    %42 = vector.load %arg7[%c0_23, %c0_24] : memref<1x128xf32, #tpu.memory_space<vmem>>, vector<1x128xf32>
    %43 = vector.broadcast %42 : vector<1x128xf32> to vector<16x128xf32>
    %44 = arith.addf %41, %43 : vector<16x128xf32>
    %45 = arith.truncf %44 : vector<16x128xf32> to vector<16x128xbf16>
    %c0_25 = arith.constant 0 : index
    %c0_26 = arith.constant 0 : index
    %46 = vector.load %arg8[%c0_25, %c0_26] : memref<128x128xbf16, #tpu.memory_space<vmem>>, vector<128x128xbf16>
    %cst_27 = arith.constant dense<0.000000e+00> : vector<16x128xf32>
    %47 = tpu.matmul %45, %46, %cst_27 {dimension_numbers = #tpu.dot_dimension_numbers<[1], [0], [0], [1], [0, 0, 1, 1], [], []>} : vector<16x128xbf16>, vector<128x128xbf16>, vector<16x128xf32> -> vector<16x128xf32>
    %c0_28 = arith.constant 0 : index
    %c0_29 = arith.constant 0 : index
    %48 = vector.load %arg9[%c0_28, %c0_29] : memref<1x128xf32, #tpu.memory_space<vmem>>, vector<1x128xf32>
    %49 = vector.broadcast %48 : vector<1x128xf32> to vector<16x128xf32>
    %50 = arith.addf %47, %49 : vector<16x128xf32>
    %51 = tpu.iota {dimensions = array<i32: 1>} : vector<16x128xi32>
    %c4_i32 = arith.constant 4 : i32
    %52 = vector.broadcast %c4_i32 : i32 to vector<16x128xi32>
    %53 = arith.cmpi slt, %51, %52 : vector<16x128xi32>
    %cst_30 = arith.constant -1.000000e+30 : f32
    %54 = vector.broadcast %cst_30 : f32 to vector<16x128xf32>
    %55 = arith.select %53, %50, %54 : vector<16x128xi1>, vector<16x128xf32>
    %cst_31 = arith.constant dense<0xFF800000> : vector<16xf32>
    %56 = vector.multi_reduction <maximumf>, %55, %cst_31 [1] : vector<16x128xf32> to vector<16xf32>
    %57 = vector.shape_cast %56 : vector<16xf32> to vector<16x1xf32>
    %58 = vector.broadcast %57 : vector<16x1xf32> to vector<16x128xf32>
    %59 = arith.subf %55, %58 : vector<16x128xf32>
    %60 = math.exp %59 : vector<16x128xf32>
    %cst_32 = arith.constant 0.000000e+00 : f32
    %61 = vector.broadcast %cst_32 : f32 to vector<16x128xf32>
    %62 = arith.select %53, %60, %61 : vector<16x128xi1>, vector<16x128xf32>
    %cst_33 = arith.constant dense<0.000000e+00> : vector<16xf32>
    %63 = vector.multi_reduction <add>, %62, %cst_33 [1] : vector<16x128xf32> to vector<16xf32>
    %64 = vector.shape_cast %63 : vector<16xf32> to vector<16x1xf32>
    %65 = math.log %64 : vector<16x1xf32>
    %66 = vector.broadcast %65 : vector<16x1xf32> to vector<16x128xf32>
    %67 = arith.subf %59, %66 : vector<16x128xf32>
    %c0_34 = arith.constant 0 : index
    %c0_35 = arith.constant 0 : index
    %68 = vector.load %arg10[%c0_34, %c0_35] : memref<16x128xf32, #tpu.memory_space<vmem>>, vector<16x128xf32>
    tpu.vector_store %arg10[%c0_34, %c0_35], %67 {strides = array<i32>} : memref<16x128xf32, #tpu.memory_space<vmem>>, vector<16x128xf32>,
    return
  }
}

</mosaic_0001>

<llo_original>
// kernel: gnn_stack_forward.1
$region0: #{gnn_stack_forward.1}
  #allocation0 [shape = 'u32[]', space=smem, size = 0x4, offset = 0x4, fixed_abs, tag = 'smem constant byte address 0x4 - core index']
  #allocation1 [shape = 'u32[144,128]{1,0:T(1,128)}', space=vmem, size = 0x12000, scoped, tag = 'internal scratch']
  %s0 = inlined_call_operand.vmem [shape: bf16[16,16], index: 0, kind: input, shape index: {}]
  %s1 = inlined_call_operand.vmem [shape: bf16[16,128], index: 1, kind: input, shape index: {}]
  %s2 = inlined_call_operand.vmem [shape: bf16[256,128], index: 2, kind: input, shape index: {}]
  %s3 = inlined_call_operand.vmem [shape: f32[1,128], index: 3, kind: input, shape index: {}]
  %s4 = inlined_call_operand.vmem [shape: bf16[256,128], index: 4, kind: input, shape index: {}]
  %s5 = inlined_call_operand.vmem [shape: f32[1,128], index: 5, kind: input, shape index: {}]
  %s6 = inlined_call_operand.vmem [shape: bf16[128,128], index: 6, kind: input, shape index: {}]
  %s7 = inlined_call_operand.vmem [shape: f32[1,128], index: 7, kind: input, shape index: {}]
  %s8 = inlined_call_operand.vmem [shape: bf16[128,128], index: 8, kind: input, shape index: {}]
  %s9 = inlined_call_operand.vmem [shape: f32[1,128], index: 9, kind: input, shape index: {}]
  %s10 = inlined_call_operand.vmem [shape: f32[16,128], index: 10, kind: output, shape index: {}]
  %s11 = sld [smem:[#allocation0]]
  $region50: #{gnn_stack_forward.1} parent=0
    _
  %s13 = ssub.s32 1, %s11
  %s14 = scalar_select 0, %s13, %s11
  // Predicated region
  $region2: #{gnn_stack_forward.1} parent=0 // pred_check
    _
  $region3: #{gnn_stack_forward.1} parent=0 // pred_check_branch
    %16 = sbr.rel (0) target = $region5
  $region4: #{gnn_stack_forward.1} parent=0 // pred_region
    _
  $region5: #{gnn_stack_forward.1} parent=0 // pred_fallthru
    _
  // Predicated region
  $region6: #{gnn_stack_forward.1} parent=0 // pred_check
    _
  $region7: #{gnn_stack_forward.1} parent=0 // pred_check_branch
    %18 = sbr.rel (0) target = $region9
  $region8: #{gnn_stack_forward.1} parent=0 // pred_region
    _
  $region9: #{gnn_stack_forward.1} parent=0 // pred_fallthru
    _
  // Predicated region
  $region10: #{gnn_stack_forward.1} parent=0 // pred_check
    _
  $region11: #{gnn_stack_forward.1} parent=0 // pred_check_branch
    %20 = sbr.rel (0) target = $region13
  $region12: #{gnn_stack_forward.1} parent=0 // pred_region
    _
  $region13: #{gnn_stack_forward.1} parent=0 // pred_fallthru
    _
  // Predicated region
  $region14: #{gnn_stack_forward.1} parent=0 // pred_check
    _
  $region15: #{gnn_stack_forward.1} parent=0 // pred_check_branch
    %22 = sbr.rel (0) target = $region17
  $region16: #{gnn_stack_forward.1} parent=0 // pred_region
    _
  $region17: #{gnn_stack_forward.1} parent=0 // pred_fallthru
    _
  // Predicated region
  $region18: #{gnn_stack_forward.1} parent=0 // pred_check
    _
  $region19: #{gnn_stack_forward.1} parent=0 // pred_check_branch
    %24 = sbr.rel (0) target = $region21
  $region20: #{gnn_stack_forward.1} parent=0 // pred_region
    _
  $region21: #{gnn_stack_forward.1} parent=0 // pred_fallthru
    _
  // Predicated region
  $region22: #{gnn_stack_forward.1} parent=0 // pred_check
    _
  $region23: #{gnn_stack_forward.1} parent=0 // pred_check_branch
    %26 = sbr.rel (0) target = $region25
  $region24: #{gnn_stack_forward.1} parent=0 // pred_region
    _
  $region25: #{gnn_stack_forward.1} parent=0 // pred_fallthru
    _
  // Predicated region
  $region26: #{gnn_stack_forward.1} parent=0 // pred_check
    _
  $region27: #{gnn_stack_forward.1} parent=0 // pred_check_branch
    %28 = sbr.rel (0) target = $region29
  $region28: #{gnn_stack_forward.1} parent=0 // pred_region
    _
  $region29: #{gnn_stack_forward.1} parent=0 // pred_fallthru
    _
  // Predicated region
  $region30: #{gnn_stack_forward.1} parent=0 // pred_check
    _
  $region31: #{gnn_stack_forward.1} parent=0 // pred_check_branch
    %30 = sbr.rel (0) target = $region33
  $region32: #{gnn_stack_forward.1} parent=0 // pred_region
    _
  $region33: #{gnn_stack_forward.1} parent=0 // pred_fallthru
    _
  // Predicated region
  $region34: #{gnn_stack_forward.1} parent=0 // pred_check
    _
  $region35: #{gnn_stack_forward.1} parent=0 // pred_check_branch
    %32 = sbr.rel (0) target = $region37
  $region36: #{gnn_stack_forward.1} parent=0 // pred_region
    _
  $region37: #{gnn_stack_forward.1} parent=0 // pred_fallthru
    _
  // Predicated region
  $region38: #{gnn_stack_forward.1} parent=0 // pred_check
    _
  $region39: #{gnn_stack_forward.1} parent=0 // pred_check_branch
    %34 = sbr.rel (0) target = $region41
  $region40: #{gnn_stack_forward.1} parent=0 // pred_region
    _
  $region41: #{gnn_stack_forward.1} parent=0 // pred_fallthru
    _
  %v36 = vld [vmem:[%s0] sm:$0xf]
  %v37 = vld [vmem:[%s0 + $0x4] sm:$0xf]
  %v38 = vld [vmem:[%s1] sm:$0xf]
  %v39 = vld [vmem:[%s1 + $0x4] sm:$0xf]
  %v42 = vunpack.c.l.b16 %v36
  %v43 = vunpack.c.l.b16 %v37
  %v44 = vpack.c.b16 %v43, %v42
  %v47 = vunpack.c.l.b16 %v38
  %v48 = vunpack.c.l.b16 %v39
  %v49 = vpack.c.b16 %v48, %v47
  %vm51 = vcmask 130048
  %v53 = vsel %vm51, %v44, 0
  %55 = vmatprep.subr.bf16.mxu0 0
  %56 = vmatpush1.bf16.msra.mxu0 %v49
  %57 = vmatprep.subr.bf16.mxu0 0
  %58 = vmatpush1.bf16.msra.mxu0 0
  %59 = vmatprep.subr.bf16.mxu0 0
  %60 = vmatpush1.bf16.msra.mxu0 0
  %61 = vmatprep.subr.bf16.mxu0 0
  %62 = vmatpush1.bf16.msra.mxu0 0
  %63 = vmatprep.subr.bf16.mxu0 0
  %64 = vmatpush1.bf16.msra.mxu0 0
  %65 = vmatprep.subr.bf16.mxu0 0
  %66 = vmatpush1.bf16.msra.mxu0 0
  %67 = vmatprep.subr.bf16.mxu0 0
  %68 = vmatpush1.bf16.msra.mxu0 0
  %69 = vmatprep.subr.bf16.mxu0 0
  %70 = vmatpush1.bf16.msra.mxu0 0
  %71 = vmatprep.subr.bf16.mxu0 0
  %72 = vmatpush1.bf16.msra.mxu0 0
  %73 = vmatprep.subr.bf16.mxu0 0
  %74 = vmatpush1.bf16.msra.mxu0 0
  %75 = vmatprep.subr.bf16.mxu0 0
  %76 = vmatpush1.bf16.msra.mxu0 0
  %77 = vmatprep.subr.bf16.mxu0 0
  %78 = vmatpush1.bf16.msra.mxu0 0
  %79 = vmatprep.subr.bf16.mxu0 0
  %80 = vmatpush1.bf16.msra.mxu0 0
  %81 = vmatprep.subr.bf16.mxu0 0
  %82 = vmatpush1.bf16.msra.mxu0 0
  %83 = vmatprep.subr.bf16.mxu0 0
  %84 = vmatpush1.bf16.msra.mxu0 0
  %85 = vmatprep.subr.bf16.mxu0 0
  %86 = vmatpush1.bf16.msra.mxu0 0
  %87 = vmatprep.mubr.bf16.mxu0 0
  %88 = vmatmul.mubr.bf16.gmra.mrb[0].mxu0 %v53
  %v89 = vpop.f32.mrb[0].mxu0
  %v90 = vadd.f32 0.0, %v89
  %v91 = vpop.f32.mrb[0].mxu0
  %v92 = vpop.f32.mrb[0].mxu0
  %v93 = vadd.f32 0.0, %v92
  %v94 = vpop.f32.mrb[0].mxu0
  %95 = vdwg.mxu0
  %v96 = vpack.c.bf16 %v93, %v90
  %v97 = vld [vmem:[%s2] sm:$0xf]
  %v98 = vld [vmem:[%s2 + $0x4] sm:$0xf]
  %v99 = vld [vmem:[%s2 + $0x8] sm:$0xf]
  %v100 = vld [vmem:[%s2 + $0xc] sm:$0xf]
  %v101 = vld [vmem:[%s2 + $0x10] sm:$0xf]
  %v102 = vld [vmem:[%s2 + $0x14] sm:$0xf]
  %v103 = vld [vmem:[%s2 + $0x18] sm:$0xf]
  %v104 = vld [vmem:[%s2 + $0x1c] sm:$0xf]
  %v105 = vld [vmem:[%s2 + $0x20] sm:$0xf]
  %v106 = vld [vmem:[%s2 + $0x24] sm:$0xf]
  %v107 = vld [vmem:[%s2 + $0x28] sm:$0xf]
  %v108 = vld [vmem:[%s2 + $0x2c] sm:$0xf]
  %v109 = vld [vmem:[%s2 + $0x30] sm:$0xf]
  %v110 = vld [vmem:[%s2 + $0x34] sm:$0xf]
  %v111 = vld [vmem:[%s2 + $0x38] sm:$0xf]
  %v112 = vld [vmem:[%s2 + $0x3c] sm:$0xf]
  %v113 = vld [vmem:[%s2 + $0x40] sm:$0xf]
  %v114 = vld [vmem:[%s2 + $0x44] sm:$0xf]
  %v115 = vld [vmem:[%s2 + $0x48] sm:$0xf]
  %v116 = vld [vmem:[%s2 + $0x4c] sm:$0xf]
  %v117 = vld [vmem:[%s2 + $0x50] sm:$0xf]
  %v118 = vld [vmem:[%s2 + $0x54] sm:$0xf]
  %v119 = vld [vmem:[%s2 + $0x58] sm:$0xf]
  %v120 = vld [vmem:[%s2 + $0x5c] sm:$0xf]
  %v121 = vld [vmem:[%s2 + $0x60] sm:$0xf]
  %v122 = vld [vmem:[%s2 + $0x64] sm:$0xf]
  %v123 = vld [vmem:[%s2 + $0x68] sm:$0xf]
  %v124 = vld [vmem:[%s2 + $0x6c] sm:$0xf]
  %v125 = vld [vmem:[%s2 + $0x70] sm:$0xf]
  %v126 = vld [vmem:[%s2 + $0x74] sm:$0xf]
  %v127 = vld [vmem:[%s2 + $0x78] sm:$0xf]
  %v128 = vld [vmem:[%s2 + $0x7c] sm:$0xf]
  %v129 = vld [vmem:[%s3] sm:$0x1]
  %v131 = vlaneseq
  %v132 = vshrl.u32 %v131, 7
  %v133 = vsub.s32 0, %v132
  %v134 = vrot.slane %v129, %v133
  %v168 = vunpack.c.l.b16 %v97
  %v169 = vunpack.c.l.b16 %v98
  %v170 = vunpack.c.l.b16 %v99
  %v171 = vunpack.c.l.b16 %v100
  %v172 = vunpack.c.l.b16 %v101
  %v173 = vunpack.c.l.b16 %v102
  %v174 = vunpack.c.l.b16 %v103
  %v175 = vunpack.c.l.b16 %v104
  %v176 = vunpack.c.l.b16 %v105
  %v177 = vunpack.c.l.b16 %v106
  %v178 = vunpack.c.l.b16 %v107
  %v179 = vunpack.c.l.b16 %v108
  %v180 = vunpack.c.l.b16 %v109
  %v181 = vunpack.c.l.b16 %v110
  %v182 = vunpack.c.l.b16 %v111
  %v183 = vunpack.c.l.b16 %v112
  %v184 = vunpack.c.l.b16 %v113
  %v185 = vunpack.c.l.b16 %v114
  %v186 = vunpack.c.l.b16 %v115
  %v187 = vunpack.c.l.b16 %v116
  %v188 = vunpack.c.l.b16 %v117
  %v189 = vunpack.c.l.b16 %v118
  %v190 = vunpack.c.l.b16 %v119
  %v191 = vunpack.c.l.b16 %v120
  %v192 = vunpack.c.l.b16 %v121
  %v193 = vunpack.c.l.b16 %v122
  %v194 = vunpack.c.l.b16 %v123
  %v195 = vunpack.c.l.b16 %v124
  %v196 = vunpack.c.l.b16 %v125
  %v197 = vunpack.c.l.b16 %v126
  %v198 = vunpack.c.l.b16 %v127
  %v199 = vunpack.c.l.b16 %v128
  %v200 = vpack.c.b16 %v169, %v168
  %v201 = vpack.c.b16 %v171, %v170
  %v202 = vpack.c.b16 %v173, %v172
  %v203 = vpack.c.b16 %v175, %v174
  %v204 = vpack.c.b16 %v177, %v176
  %v205 = vpack.c.b16 %v179, %v178
  %v206 = vpack.c.b16 %v181, %v180
  %v207 = vpack.c.b16 %v183, %v182
  %v208 = vpack.c.b16 %v185, %v184
  %v209 = vpack.c.b16 %v187, %v186
  %v210 = vpack.c.b16 %v189, %v188
  %v211 = vpack.c.b16 %v191, %v190
  %v212 = vpack.c.b16 %v193, %v192
  %v213 = vpack.c.b16 %v195, %v194
  %v214 = vpack.c.b16 %v197, %v196
  %v215 = vpack.c.b16 %v199, %v198
  %232 = vmatprep.subr.bf16.mxu0 0
  %233 = vmatpush1.bf16.msra.mxu0 %v200
  %234 = vmatprep.subr.bf16.mxu0 0
  %235 = vmatpush1.bf16.msra.mxu0 %v201
  %236 = vmatprep.subr.bf16.mxu0 0
  %237 = vmatpush1.bf16.msra.mxu0 %v202
  %238 = vmatprep.subr.bf16.mxu0 0
  %239 = vmatpush1.bf16.msra.mxu0 %v203
  %240 = vmatprep.subr.bf16.mxu0 0
  %241 = vmatpush1.bf16.msra.mxu0 %v204
  %242 = vmatprep.subr.bf16.mxu0 0
  %243 = vmatpush1.bf16.msra.mxu0 %v205
  %244 = vmatprep.subr.bf16.mxu0 0
  %245 = vmatpush1.bf16.msra.mxu0 %v206
  %246 = vmatprep.subr.bf16.mxu0 0
  %247 = vmatpush1.bf16.msra.mxu0 %v207
  %248 = vmatprep.subr.bf16.mxu0 0
  %249 = vmatpush1.bf16.msra.mxu0 %v208
  %250 = vmatprep.subr.bf16.mxu0 0
  %251 = vmatpush1.bf16.msra.mxu0 %v209
  %252 = vmatprep.subr.bf16.mxu0 0
  %253 = vmatpush1.bf16.msra.mxu0 %v210
  %254 = vmatprep.subr.bf16.mxu0 0
  %255 = vmatpush1.bf16.msra.mxu0 %v211
  %256 = vmatprep.subr.bf16.mxu0 0
  %257 = vmatpush1.bf16.msra.mxu0 %v212
  %258 = vmatprep.subr.bf16.mxu0 0
  %259 = vmatpush1.bf16.msra.mxu0 %v213
  %260 = vmatprep.subr.bf16.mxu0 0
  %261 = vmatpush1.bf16.msra.mxu0 %v214
  %262 = vmatprep.subr.bf16.mxu0 0
  %263 = vmatpush1.bf16.msra.mxu0 %v215
  %264 = vmatprep.mubr.bf16.mxu0 %v96
  %265 = vmatmul.mubr.bf16.gmra.mrb[0].mxu0 %v49
  %v266 = vpop.f32.mrb[0].mxu0
  %v267 = vadd.f32 %v134, %v266
  %v268 = vpop.f32.mrb[0].mxu0
  %v269 = vpop.f32.mrb[0].mxu0
  %v270 = vadd.f32 %v134, %v269
  %v271 = vpop.f32.mrb[0].mxu0
  %272 = vdwg.mxu0
  %v273 = vmul.f32 %v267, %v267
  %v274 = vmul.f32 %v270, %v270
  %275 = vadd.xlane.f32.xlu0 %v273
  %v276 = vpop.xlane.xlu0 %275
  %277 = vadd.xlane.f32.xlu0 %v274
  %v278 = vpop.xlane.xlu0 %277
  %v279 = vmax.f32 %v276, 1e-24
  %v280 = vmax.f32 %v278, 1e-24
  %v281 = vrsqrt.pop %v279
  %v282 = vrsqrt.pop %v280
  %v283 = vmul.f32 %v267, %v281
  %v284 = vmul.f32 %v270, %v282
  %v285 = vmax.f32 %v283, 0.0
  %v286 = vmax.f32 %v284, 0.0
  %v287 = vpack.c.bf16 %v286, %v285
  %288 = vmatprep.subr.bf16.mxu0 0
  %289 = vmatpush1.bf16.msra.mxu0 %v287
  %290 = vmatprep.subr.bf16.mxu0 0
  %291 = vmatpush1.bf16.msra.mxu0 0
  %292 = vmatprep.subr.bf16.mxu0 0
  %293 = vmatpush1.bf16.msra.mxu0 0
  %294 = vmatprep.subr.bf16.mxu0 0
  %295 = vmatpush1.bf16.msra.mxu0 0
  %296 = vmatprep.subr.bf16.mxu0 0
  %297 = vmatpush1.bf16.msra.mxu0 0
  %298 = vmatprep.subr.bf16.mxu0 0
  %299 = vmatpush1.bf16.msra.mxu0 0
  %300 = vmatprep.subr.bf16.mxu0 0
  %301 = vmatpush1.bf16.msra.mxu0 0
  %302 = vmatprep.subr.bf16.mxu0 0
  %303 = vmatpush1.bf16.msra.mxu0 0
  %304 = vmatprep.subr.bf16.mxu0 0
  %305 = vmatpush1.bf16.msra.mxu0 0
  %306 = vmatprep.subr.bf16.mxu0 0
  %307 = vmatpush1.bf16.msra.mxu0 0
  %308 = vmatprep.subr.bf16.mxu0 0
  %309 = vmatpush1.bf16.msra.mxu0 0
  %310 = vmatprep.subr.bf16.mxu0 0
  %311 = vmatpush1.bf16.msra.mxu0 0
  %312 = vmatprep.subr.bf16.mxu0 0
  %313 = vmatpush1.bf16.msra.mxu0 0
  %314 = vmatprep.subr.bf16.mxu0 0
  %315 = vmatpush1.bf16.msra.mxu0 0
  %316 = vmatprep.subr.bf16.mxu0 0
  %317 = vmatpush1.bf16.msra.mxu0 0
  %318 = vmatprep.subr.bf16.mxu0 0
  %319 = vmatpush1.bf16.msra.mxu0 0
  %320 = vmatprep.mubr.bf16.mxu0 0
  %321 = vmatmul.mubr.bf16.gmra.mrb[0].mxu0 %v53
  %v322 = vpop.f32.mrb[0].mxu0
  %v323 = vadd.f32 0.0, %v322
  %v324 = vpop.f32.mrb[0].mxu0
  %v325 = vpop.f32.mrb[0].mxu0
  %v326 = vadd.f32 0.0, %v325
  %v327 = vpop.f32.mrb[0].mxu0
  %328 = vdwg.mxu0
  %v329 = vpack.c.bf16 %v326, %v323
  %v330 = vld [vmem:[%s4] sm:$0xf]
  %v331 = vld [vmem:[%s4 + $0x4] sm:$0xf]
  %v332 = vld [vmem:[%s4 + $0x8] sm:$0xf]
  %v333 = vld [vmem:[%s4 + $0xc] sm:$0xf]
  %v334 = vld [vmem:[%s4 + $0x10] sm:$0xf]
  %v335 = vld [vmem:[%s4 + $0x14] sm:$0xf]
  %v336 = vld [vmem:[%s4 + $0x18] sm:$0xf]
  %v337 = vld [vmem:[%s4 + $0x1c] sm:$0xf]
  %v338 = vld [vmem:[%s4 + $0x20] sm:$0xf]
  %v339 = vld [vmem:[%s4 + $0x24] sm:$0xf]
  %v340 = vld [vmem:[%s4 + $0x28] sm:$0xf]
  %v341 = vld [vmem:[%s4 + $0x2c] sm:$0xf]
  %v342 = vld [vmem:[%s4 + $0x30] sm:$0xf]
  %v343 = vld [vmem:[%s4 + $0x34] sm:$0xf]
  %v344 = vld [vmem:[%s4 + $0x38] sm:$0xf]
  %v345 = vld [vmem:[%s4 + $0x3c] sm:$0xf]
  %v346 = vld [vmem:[%s4 + $0x40] sm:$0xf]
  %v347 = vld [vmem:[%s4 + $0x44] sm:$0xf]
  %v348 = vld [vmem:[%s4 + $0x48] sm:$0xf]
  %v349 = vld [vmem:[%s4 + $0x4c] sm:$0xf]
  %v350 = vld [vmem:[%s4 + $0x50] sm:$0xf]
  %v351 = vld [vmem:[%s4 + $0x54] sm:$0xf]
  %v352 = vld [vmem:[%s4 + $0x58] sm:$0xf]
  %v353 = vld [vmem:[%s4 + $0x5c] sm:$0xf]
  %v354 = vld [vmem:[%s4 + $0x60] sm:$0xf]
  %v355 = vld [vmem:[%s4 + $0x64] sm:$0xf]
  %v356 = vld [vmem:[%s4 + $0x68] sm:$0xf]
  %v357 = vld [vmem:[%s4 + $0x6c] sm:$0xf]
  %v358 = vld [vmem:[%s4 + $0x70] sm:$0xf]
  %v359 = vld [vmem:[%s4 + $0x74] sm:$0xf]
  %v360 = vld [vmem:[%s4 + $0x78] sm:$0xf]
  %v361 = vld [vmem:[%s4 + $0x7c] sm:$0xf]
  %v362 = vld [vmem:[%s5] sm:$0x1]
  %v364 = vlaneseq
  %v365 = vshrl.u32 %v364, 7
  %v366 = vsub.s32 0, %v365
  %v367 = vrot.slane %v362, %v366
  %v401 = vunpack.c.l.b16 %v330
  %v402 = vunpack.c.l.b16 %v331
  %v403 = vunpack.c.l.b16 %v332
  %v404 = vunpack.c.l.b16 %v333
  %v405 = vunpack.c.l.b16 %v334
  %v406 = vunpack.c.l.b16 %v335
  %v407 = vunpack.c.l.b16 %v336
  %v408 = vunpack.c.l.b16 %v337
  %v409 = vunpack.c.l.b16 %v338
  %v410 = vunpack.c.l.b16 %v339
  %v411 = vunpack.c.l.b16 %v340
  %v412 = vunpack.c.l.b16 %v341
  %v413 = vunpack.c.l.b16 %v342
  %v414 = vunpack.c.l.b16 %v343
  %v415 = vunpack.c.l.b16 %v344
  %v416 = vunpack.c.l.b16 %v345
  %v417 = vunpack.c.l.b16 %v346
  %v418 = vunpack.c.l.b16 %v347
  %v419 = vunpack.c.l.b16 %v348
  %v420 = vunpack.c.l.b16 %v349
  %v421 = vunpack.c.l.b16 %v350
  %v422 = vunpack.c.l.b16 %v351
  %v423 = vunpack.c.l.b16 %v352
  %v424 = vunpack.c.l.b16 %v353
  %v425 = vunpack.c.l.b16 %v354
  %v426 = vunpack.c.l.b16 %v355
  %v427 = vunpack.c.l.b16 %v356
  %v428 = vunpack.c.l.b16 %v357
  %v429 = vunpack.c.l.b16 %v358
  %v430 = vunpack.c.l.b16 %v359
  %v431 = vunpack.c.l.b16 %v360
  %v432 = vunpack.c.l.b16 %v361
  %v433 = vpack.c.b16 %v402, %v401
  %v434 = vpack.c.b16 %v404, %v403
  %v435 = vpack.c.b16 %v406, %v405
  %v436 = vpack.c.b16 %v408, %v407
  %v437 = vpack.c.b16 %v410, %v409
  %v438 = vpack.c.b16 %v412, %v411
  %v439 = vpack.c.b16 %v414, %v413
  %v440 = vpack.c.b16 %v416, %v415
  %v441 = vpack.c.b16 %v418, %v417
  %v442 = vpack.c.b16 %v420, %v419
  %v443 = vpack.c.b16 %v422, %v421
  %v444 = vpack.c.b16 %v424, %v423
  %v445 = vpack.c.b16 %v426, %v425
  %v446 = vpack.c.b16 %v428, %v427
  %v447 = vpack.c.b16 %v430, %v429
  %v448 = vpack.c.b16 %v432, %v431
  %465 = vmatprep.subr.bf16.mxu0 0
  %466 = vmatpush1.bf16.msra.mxu0 %v433
  %467 = vmatprep.subr.bf16.mxu0 0
  %468 = vmatpush1.bf16.msra.mxu0 %v434
  %469 = vmatprep.subr.bf16.mxu0 0
  %470 = vmatpush1.bf16.msra.mxu0 %v435
  %471 = vmatprep.subr.bf16.mxu0 0
  %472 = vmatpush1.bf16.msra.mxu0 %v436
  %473 = vmatprep.subr.bf16.mxu0 0
  %474 = vmatpush1.bf16.msra.mxu0 %v437
  %475 = vmatprep.subr.bf16.mxu0 0
  %476 = vmatpush1.bf16.msra.mxu0 %v438
  %477 = vmatprep.subr.bf16.mxu0 0
  %478 = vmatpush1.bf16.msra.mxu0 %v439
  %479 = vmatprep.subr.bf16.mxu0 0
  %480 = vmatpush1.bf16.msra.mxu0 %v440
  %481 = vmatprep.subr.bf16.mxu0 0
  %482 = vmatpush1.bf16.msra.mxu0 %v441
  %483 = vmatprep.subr.bf16.mxu0 0
  %484 = vmatpush1.bf16.msra.mxu0 %v442
  %485 = vmatprep.subr.bf16.mxu0 0
  %486 = vmatpush1.bf16.msra.mxu0 %v443
  %487 = vmatprep.subr.bf16.mxu0 0
  %488 = vmatpush1.bf16.msra.mxu0 %v444
  %489 = vmatprep.subr.bf16.mxu0 0
  %490 = vmatpush1.bf16.msra.mxu0 %v445
  %491 = vmatprep.subr.bf16.mxu0 0
  %492 = vmatpush1.bf16.msra.mxu0 %v446
  %493 = vmatprep.subr.bf16.mxu0 0
  %494 = vmatpush1.bf16.msra.mxu0 %v447
  %495 = vmatprep.subr.bf16.mxu0 0
  %496 = vmatpush1.bf16.msra.mxu0 %v448
  %497 = vmatprep.mubr.bf16.mxu0 %v329
  %498 = vmatmul.mubr.bf16.gmra.mrb[0].mxu0 %v287
  %v499 = vpop.f32.mrb[0].mxu0
  %v500 = vadd.f32 %v367, %v499
  %v501 = vpop.f32.mrb[0].mxu0
  %v502 = vpop.f32.mrb[0].mxu0
  %v503 = vadd.f32 %v367, %v502
  %v504 = vpop.f32.mrb[0].mxu0
  %505 = vdwg.mxu0
  %v506 = vmul.f32 %v500, %v500
  %v507 = vmul.f32 %v503, %v503
  %508 = vadd.xlane.f32.xlu0 %v506
  %v509 = vpop.xlane.xlu0 %508
  %510 = vadd.xlane.f32.xlu0 %v507
  %v511 = vpop.xlane.xlu0 %510
  %v512 = vmax.f32 %v509, 1e-24
  %v513 = vmax.f32 %v511, 1e-24
  %v514 = vrsqrt.pop %v512
  %v515 = vrsqrt.pop %v513
  %v516 = vmul.f32 %v500, %v514
  %v517 = vmul.f32 %v503, %v515
  %v518 = vmax.f32 %v516, 0.0
  %v519 = vmax.f32 %v517, 0.0
  %v520 = vpack.c.bf16 %v519, %v518
  %v521 = vld [vmem:[%s6] sm:$0xf]
  %v522 = vld [vmem:[%s6 + $0x4] sm:$0xf]
  %v523 = vld [vmem:[%s6 + $0x8] sm:$0xf]
  %v524 = vld [vmem:[%s6 + $0xc] sm:$0xf]
  %v525 = vld [vmem:[%s6 + $0x10] sm:$0xf]
  %v526 = vld [vmem:[%s6 + $0x14] sm:$0xf]
  %v527 = vld [vmem:[%s6 + $0x18] sm:$0xf]
  %v528 = vld [vmem:[%s6 + $0x1c] sm:$0xf]
  %v529 = vld [vmem:[%s6 + $0x20] sm:$0xf]
  %v530 = vld [vmem:[%s6 + $0x24] sm:$0xf]
  %v531 = vld [vmem:[%s6 + $0x28] sm:$0xf]
  %v532 = vld [vmem:[%s6 + $0x2c] sm:$0xf]
  %v533 = vld [vmem:[%s6 + $0x30] sm:$0xf]
  %v534 = vld [vmem:[%s6 + $0x34] sm:$0xf]
  %v535 = vld [vmem:[%s6 + $0x38] sm:$0xf]
  %v536 = vld [vmem:[%s6 + $0x3c] sm:$0xf]
  %v537 = vld [vmem:[%s7] sm:$0x1]
  %v539 = vlaneseq
  %v540 = vshrl.u32 %v539, 7
  %v541 = vsub.s32 0, %v540
  %v542 = vrot.slane %v537, %v541
  %v560 = vunpack.c.l.b16 %v521
  %v561 = vunpack.c.l.b16 %v522
  %v562 = vunpack.c.l.b16 %v523
  %v563 = vunpack.c.l.b16 %v524
  %v564 = vunpack.c.l.b16 %v525
  %v565 = vunpack.c.l.b16 %v526
  %v566 = vunpack.c.l.b16 %v527
  %v567 = vunpack.c.l.b16 %v528
  %v568 = vunpack.c.l.b16 %v529
  %v569 = vunpack.c.l.b16 %v530
  %v570 = vunpack.c.l.b16 %v531
  %v571 = vunpack.c.l.b16 %v532
  %v572 = vunpack.c.l.b16 %v533
  %v573 = vunpack.c.l.b16 %v534
  %v574 = vunpack.c.l.b16 %v535
  %v575 = vunpack.c.l.b16 %v536
  %v576 = vpack.c.b16 %v561, %v560
  %v577 = vpack.c.b16 %v563, %v562
  %v578 = vpack.c.b16 %v565, %v564
  %v579 = vpack.c.b16 %v567, %v566
  %v580 = vpack.c.b16 %v569, %v568
  %v581 = vpack.c.b16 %v571, %v570
  %v582 = vpack.c.b16 %v573, %v572
  %v583 = vpack.c.b16 %v575, %v574
  %592 = vmatprep.subr.bf16.mxu0 0
  %593 = vmatpush1.bf16.msra.mxu0 %v576
  %594 = vmatprep.subr.bf16.mxu0 0
  %595 = vmatpush1.bf16.msra.mxu0 %v577
  %596 = vmatprep.subr.bf16.mxu0 0
  %597 = vmatpush1.bf16.msra.mxu0 %v578
  %598 = vmatprep.subr.bf16.mxu0 0
  %599 = vmatpush1.bf16.msra.mxu0 %v579
  %600 = vmatprep.subr.bf16.mxu0 0
  %601 = vmatpush1.bf16.msra.mxu0 %v580
  %602 = vmatprep.subr.bf16.mxu0 0
  %603 = vmatpush1.bf16.msra.mxu0 %v581
  %604 = vmatprep.subr.bf16.mxu0 0
  %605 = vmatpush1.bf16.msra.mxu0 %v582
  %606 = vmatprep.subr.bf16.mxu0 0
  %607 = vmatpush1.bf16.msra.mxu0 %v583
  %608 = vmatprep.subr.bf16.mxu0 0
  %609 = vmatpush1.bf16.msra.mxu0 0
  %610 = vmatprep.subr.bf16.mxu0 0
  %611 = vmatpush1.bf16.msra.mxu0 0
  %612 = vmatprep.subr.bf16.mxu0 0
  %613 = vmatpush1.bf16.msra.mxu0 0
  %614 = vmatprep.subr.bf16.mxu0 0
  %615 = vmatpush1.bf16.msra.mxu0 0
  %616 = vmatprep.subr.bf16.mxu0 0
  %617 = vmatpush1.bf16.msra.mxu0 0
  %618 = vmatprep.subr.bf16.mxu0 0
  %619 = vmatpush1.bf16.msra.mxu0 0
  %620 = vmatprep.subr.bf16.mxu0 0
  %621 = vmatpush1.bf16.msra.mxu0 0
  %622 = vmatprep.subr.bf16.mxu0 0
  %623 = vmatpush1.bf16.msra.mxu0 0
  %624 = vmatprep.mubr.bf16.mxu0 0
  %625 = vmatmul.mubr.bf16.gmra.mrb[0].mxu0 %v520
  %v626 = vpop.f32.mrb[0].mxu0
  %v627 = vadd.f32 %v542, %v626
  %v628 = vpop.f32.mrb[0].mxu0
  %v629 = vpop.f32.mrb[0].mxu0
  %v630 = vadd.f32 %v542, %v629
  %v631 = vpop.f32.mrb[0].mxu0
  %632 = vdwg.mxu0
  %v633 = vpack.c.bf16 %v630, %v627
  %v634 = vld [vmem:[%s8] sm:$0xf]
  %v635 = vld [vmem:[%s8 + $0x4] sm:$0xf]
  %v636 = vld [vmem:[%s8 + $0x8] sm:$0xf]
  %v637 = vld [vmem:[%s8 + $0xc] sm:$0xf]
  %v638 = vld [vmem:[%s8 + $0x10] sm:$0xf]
  %v639 = vld [vmem:[%s8 + $0x14] sm:$0xf]
  %v640 = vld [vmem:[%s8 + $0x18] sm:$0xf]
  %v641 = vld [vmem:[%s8 + $0x1c] sm:$0xf]
  %v642 = vld [vmem:[%s8 + $0x20] sm:$0xf]
  %v643 = vld [vmem:[%s8 + $0x24] sm:$0xf]
  %v644 = vld [vmem:[%s8 + $0x28] sm:$0xf]
  %v645 = vld [vmem:[%s8 + $0x2c] sm:$0xf]
  %v646 = vld [vmem:[%s8 + $0x30] sm:$0xf]
  %v647 = vld [vmem:[%s8 + $0x34] sm:$0xf]
  %v648 = vld [vmem:[%s8 + $0x38] sm:$0xf]
  %v649 = vld [vmem:[%s8 + $0x3c] sm:$0xf]
  %v650 = vld [vmem:[%s9] sm:$0x1]
  %v652 = vlaneseq
  %v653 = vshrl.u32 %v652, 7
  %v654 = vsub.s32 0, %v653
  %v655 = vrot.slane %v650, %v654
  %v673 = vunpack.c.l.b16 %v634
  %v674 = vunpack.c.l.b16 %v635
  %v675 = vunpack.c.l.b16 %v636
  %v676 = vunpack.c.l.b16 %v637
  %v677 = vunpack.c.l.b16 %v638
  %v678 = vunpack.c.l.b16 %v639
  %v679 = vunpack.c.l.b16 %v640
  %v680 = vunpack.c.l.b16 %v641
  %v681 = vunpack.c.l.b16 %v642
  %v682 = vunpack.c.l.b16 %v643
  %v683 = vunpack.c.l.b16 %v644
  %v684 = vunpack.c.l.b16 %v645
  %v685 = vunpack.c.l.b16 %v646
  %v686 = vunpack.c.l.b16 %v647
  %v687 = vunpack.c.l.b16 %v648
  %v688 = vunpack.c.l.b16 %v649
  %v689 = vpack.c.b16 %v674, %v673
  %v690 = vpack.c.b16 %v676, %v675
  %v691 = vpack.c.b16 %v678, %v677
  %v692 = vpack.c.b16 %v680, %v679
  %v693 = vpack.c.b16 %v682, %v681
  %v694 = vpack.c.b16 %v684, %v683
  %v695 = vpack.c.b16 %v686, %v685
  %v696 = vpack.c.b16 %v688, %v687
  %705 = vmatprep.subr.bf16.mxu0 0
  %706 = vmatpush1.bf16.msra.mxu0 %v689
  %707 = vmatprep.subr.bf16.mxu0 0
  %708 = vmatpush1.bf16.msra.mxu0 %v690
  %709 = vmatprep.subr.bf16.mxu0 0
  %710 = vmatpush1.bf16.msra.mxu0 %v691
  %711 = vmatprep.subr.bf16.mxu0 0
  %712 = vmatpush1.bf16.msra.mxu0 %v692
  %713 = vmatprep.subr.bf16.mxu0 0
  %714 = vmatpush1.bf16.msra.mxu0 %v693
  %715 = vmatprep.subr.bf16.mxu0 0
  %716 = vmatpush1.bf16.msra.mxu0 %v694
  %717 = vmatprep.subr.bf16.mxu0 0
  %718 = vmatpush1.bf16.msra.mxu0 %v695
  %719 = vmatprep.subr.bf16.mxu0 0
  %720 = vmatpush1.bf16.msra.mxu0 %v696
  %721 = vmatprep.subr.bf16.mxu0 0
  %722 = vmatpush1.bf16.msra.mxu0 0
  %723 = vmatprep.subr.bf16.mxu0 0
  %724 = vmatpush1.bf16.msra.mxu0 0
  %725 = vmatprep.subr.bf16.mxu0 0
  %726 = vmatpush1.bf16.msra.mxu0 0
  %727 = vmatprep.subr.bf16.mxu0 0
  %728 = vmatpush1.bf16.msra.mxu0 0
  %729 = vmatprep.subr.bf16.mxu0 0
  %730 = vmatpush1.bf16.msra.mxu0 0
  %731 = vmatprep.subr.bf16.mxu0 0
  %732 = vmatpush1.bf16.msra.mxu0 0
  %733 = vmatprep.subr.bf16.mxu0 0
  %734 = vmatpush1.bf16.msra.mxu0 0
  %735 = vmatprep.subr.bf16.mxu0 0
  %736 = vmatpush1.bf16.msra.mxu0 0
  %737 = vmatprep.mubr.bf16.mxu0 0
  %738 = vmatmul.mubr.bf16.gmra.mrb[0].mxu0 %v633
  %v739 = vpop.f32.mrb[0].mxu0
  %v740 = vadd.f32 %v655, %v739
  %v741 = vpop.f32.mrb[0].mxu0
  %v742 = vpop.f32.mrb[0].mxu0
  %v743 = vadd.f32 %v655, %v742
  %v744 = vpop.f32.mrb[0].mxu0
  %745 = vdwg.mxu0
  %v746 = vlaneseq
  %v747 = vand.u32 %v746, 127
  %vm748 = vcmp.lt.s32.totalorder %v747, 4
  %v749 = vsel %vm748, %v740, -1e+30
  %v750 = vsel %vm748, %v743, -1e+30
  %751 = vmax.xlane.f32.xlu0 %v749
  %v752 = vpop.xlane.xlu0 %751
  %753 = vmax.xlane.f32.xlu0 %v750
  %v754 = vpop.xlane.xlu0 %753
  %v755 = vsub.f32 %v749, %v752
  %v756 = vsub.f32 %v750, %v754
  %v757 = vmul.f32 %v755, 1.442695
  %v758 = vpow.pop %v757
  %v759 = vmul.f32 %v756, 1.442695
  %v760 = vpow.pop %v759
  %v761 = vsel %vm748, %v758, 0.0
  %v762 = vsel %vm748, %v760, 0.0
  %763 = vadd.xlane.f32.xlu0 %v761
  %v764 = vpop.xlane.xlu0 %763
  %765 = vadd.xlane.f32.xlu0 %v762
  %v766 = vpop.xlane.xlu0 %765
  %v767 = vlog2.pop %v764
  %v768 = vmul.f32 %v767, 0.6931472
  %v769 = vlog2.pop %v766
  %v770 = vmul.f32 %v769, 0.6931472
  %v771 = vsub.f32 %v755, %v768
  %v772 = vsub.f32 %v756, %v770
  %773 = vst [vmem:[%s10] sm:$0xff] %v771
  %774 = vst [vmem:[%s10 + $0x8] sm:$0xff] %v772
  // Predicated region
  $region42: #{gnn_stack_forward.1} parent=0 // pred_check
    _
  $region43: #{gnn_stack_forward.1} parent=0 // pred_check_branch
    %776 = sbr.rel (0) target = $region45
  $region44: #{gnn_stack_forward.1} parent=0 // pred_region
    _
  $region45: #{gnn_stack_forward.1} parent=0 // pred_fallthru
    _
  // Predicated region
  $region46: #{gnn_stack_forward.1} parent=0 // pred_check
    _
  $region47: #{gnn_stack_forward.1} parent=0 // pred_check_branch
    %778 = sbr.rel (0) target = $region49
  $region48: #{gnn_stack_forward.1} parent=0 // pred_region
    _
  $region49: #{gnn_stack_forward.1} parent=0 // pred_fallthru
    _

</llo_original>
